<compile_context>
chip_gen: v7x
topology: tpu7x:2x2x1
jax: 0.10.0
libtpu: 0.0.40
codegen_flags: <defaults>
</compile_context>

<pallas_src>
import functools

import jax
import jax.numpy as jnp
from jax import lax
from jax.experimental import pallas as pl
from jax.experimental.pallas import tpu as pltpu

LANE = 128  # class dim padded to a multiple of this -> lane-dense matmul/stores


def appnp_kernel(x_ref, w1_ref, b1_ref, w2_ref, b2_ref, adj2_ref, *rest, n2, rem):
    # rest = (adj1_ref, o_ref, rhs_scratch) if K is odd else (o_ref, rhs_scratch)
    if rem:
        adj1_ref, o_ref, rhs_ref = rest
    else:
        o_ref, rhs_ref = rest
    n = x_ref.shape[0]

    # lin1 -> ReLU.  Dropout is identity in eval mode (training=False): elided.
    z = jnp.dot(
        x_ref[...].astype(jnp.bfloat16), w1_ref[...],
        preferred_element_type=jnp.float32,
    )
    z = jnp.maximum(z + b1_ref[...], 0.0)

    # lin2 (weights zero-padded to Cp columns -> lane-dense result).
    h = jnp.dot(
        z.astype(jnp.bfloat16), w2_ref[...],
        preferred_element_type=jnp.float32,
    ) + b2_ref[...]

    # APPNP: x_{k+1} = A_s @ x_k + alpha*h, x_0 = h.  Augmented-contraction
    # form: rhs scratch = [x_k ; h] (2N, Cp) bf16; adj_aug2 advances TWO steps
    # per dot (no per-step VPU add, 2N-deep contraction).
    h_bf = h.astype(jnp.bfloat16)
    rhs_ref[:n, :] = h_bf   # top half: current x_k (starts at h)
    rhs_ref[n:, :] = h_bf   # bottom half: h, written once
    adj2 = adj2_ref[...]

    def doubled_step(_, _carry):
        nxt = jnp.dot(adj2, rhs_ref[...], preferred_element_type=jnp.float32)
        rhs_ref[:n, :] = nxt.astype(jnp.bfloat16)
        return nxt  # carry the f32 result for the final store

    # unroll=True is fine at this (64 x 128) tile (tiny live set); do NOT keep
    # a full unroll once this is row-tiled at large N (vreg spills).
    xk = lax.fori_loop(0, n2, doubled_step, h, unroll=True)

    if rem:  # static: one leftover single-power step when K is odd
        xk = jnp.dot(adj1_ref[...], rhs_ref[...], preferred_element_type=jnp.float32)

    o_ref[...] = xk  # f32, lane-dense (Cp is a multiple of 128)


def prepare_params(w1, b1, w2, b2, adj, *, alpha):
    """One-time parameter / propagation-operator prep (hoisted out of the hot path).

    w1:[H,D], b1:[H], w2:[C,H], b2:[C], adj:[N,N] GCN-normalized adjacency.
    """
    H, D = w1.shape
    C = w2.shape[0]
    Cp = LANE * pl.cdiv(C, LANE)          # lane-dense padded class dim (C<=128 -> 128)
    N = adj.shape[0]

    w1_t = w1.T.astype(jnp.bfloat16)                                    # [D, H]
    b1_r = b1.reshape(1, H).astype(jnp.float32)
    w2_tp = jnp.zeros((H, Cp), jnp.bfloat16).at[:, :C].set(w2.T.astype(jnp.bfloat16))
    b2_rp = jnp.zeros((1, Cp), jnp.float32).at[:, :C].set(b2)

    a_s = (1.0 - alpha) * adj                                           # one-time
    eye = jnp.eye(N, dtype=jnp.float32)
    adj_aug1 = jnp.concatenate([a_s, alpha * eye], axis=1)              # [N, 2N]
    adj_aug2 = jnp.concatenate([a_s @ a_s, alpha * (a_s + eye)], axis=1)
    return dict(
        w1_t=w1_t, b1=b1_r, w2_t=w2_tp, b2=b2_rp,
        adj_aug1=adj_aug1.astype(jnp.bfloat16),
        adj_aug2=adj_aug2.astype(jnp.bfloat16),
    )


@functools.partial(jax.jit, static_argnames=("K", "num_classes"))
def appnp_forward(x, params, *, K, num_classes):
    N, D = x.shape
    H = params["w1_t"].shape[1]
    Cp = params["w2_t"].shape[1]
    C = num_classes
    n2, rem = divmod(K, 2)

    args = [x, params["w1_t"], params["b1"], params["w2_t"], params["b2"],
            params["adj_aug2"]]
    if rem:
        args.append(params["adj_aug1"])

    vmem = pl.BlockSpec(memory_space=pltpu.MemorySpace.VMEM)

    # Advisory estimate with the TRUE class count (not padded Cp).
    flops = 2 * N * D * H + 2 * N * H * C + 2 * K * N * N * C
    bytes_accessed = (
        4 * N * D                         # x (f32)
        + 2 * D * H + 4 * H               # w1 (bf16), b1 (f32)
        + 2 * H * Cp + 4 * Cp             # w2 (bf16), b2 (f32)
        + 2 * N * (2 * N) * (1 + rem)     # propagation operator(s), bf16
        + 4 * N * Cp                      # output (f32)
    )
    cost = pl.CostEstimate(flops=flops, transcendentals=0,
                           bytes_accessed=bytes_accessed)

    out_p = pl.pallas_call(
        functools.partial(appnp_kernel, n2=n2, rem=rem),
        out_shape=jax.ShapeDtypeStruct((N, Cp), jnp.float32),
        in_specs=[vmem] * len(args),
        out_specs=vmem,
        scratch_shapes=[pltpu.VMEM((2 * N, Cp), jnp.bfloat16)],
        cost_estimate=cost,
    )(*args)
    return out_p[:, :C]


def build_normalized_adj(edge_index, num_nodes):
    """Dense GCN-normalized adjacency, matching PyG gcn_norm semantics:
    existing self-loops are dropped and exactly one self-loop per node added."""
    src, dst = edge_index[0], edge_index[1]
    w = jnp.where(src != dst, 1.0, 0.0)  # drop pre-existing self loops
    a = jnp.zeros((num_nodes, num_nodes), jnp.float32).at[dst, src].add(w)
    a = a + jnp.eye(num_nodes, dtype=jnp.float32)  # add_remaining_self_loops
    deg = a.sum(axis=1)
    dinv = jnp.where(deg > 0, deg ** -0.5, 0.0)
    return dinv[:, None] * a * dinv[None, :]


if __name__ == "__main__":
    # args: input_dim=32, hidden_dim=32, num_classes=8, K=10, alpha=0.1, dropout=0.5
    N, E = 64, 256
    input_dim, hidden_dim, num_classes = 32, 32, 8
    K, alpha = 10, 0.1

    key = jax.random.PRNGKey(0)
    kx, ke1, ke2, kw1, kb1, kw2, kb2 = jax.random.split(key, 7)

    x = jax.random.normal(kx, (N, input_dim), jnp.float32)
    edge_index = jnp.stack(
        [
            jax.random.randint(ke1, (E,), 0, N, jnp.int32),
            jax.random.randint(ke2, (E,), 0, N, jnp.int32),
        ]
    )

    # nn.Linear weights: [out, in]
    w1 = jax.random.normal(kw1, (hidden_dim, input_dim), jnp.float32) * 0.1
    b1 = jax.random.normal(kb1, (hidden_dim,), jnp.float32) * 0.1
    w2 = jax.random.normal(kw2, (num_classes, hidden_dim), jnp.float32) * 0.1
    b2 = jax.random.normal(kb2, (num_classes,), jnp.float32) * 0.1

    adj = build_normalized_adj(edge_index, N)

    # One-time prep (not in the per-call hot path).
    params = prepare_params(w1, b1, w2, b2, adj, alpha=alpha)

    out = appnp_forward(x, params, K=K, num_classes=num_classes)
    out = jax.block_until_ready(out)
    assert out.shape == (N, num_classes)

    # Reference check (pure f32 JAX, eval semantics: dropout elided). The
    # kernel feeds the MXU bf16 inputs (f32 accumulation), so tolerance is
    # bf16-level rather than f32-tight.
    z_ref = jnp.maximum(x @ w1.T + b1, 0.0)
    h_ref = z_ref @ w2.T + b2
    xk = h_ref
    for _ in range(K):
        xk = (1.0 - alpha) * (adj @ xk) + alpha * h_ref
    err = float(jnp.max(jnp.abs(out - xk)))
    assert err < 5e-2, f"max abs err {err}"

    print("KERNEL_OK")
</pallas_src>

<mosaic_0001>
module attributes {stable_mosaic.version = 11 : i64} {
  func.func @appnp_kernel(%arg0: memref<64x32xf32, #tpu.memory_space<vmem>>, %arg1: memref<32x32xbf16, #tpu.memory_space<vmem>>, %arg2: memref<1x32xf32, #tpu.memory_space<vmem>>, %arg3: memref<32x128xbf16, #tpu.memory_space<vmem>>, %arg4: memref<1x128xf32, #tpu.memory_space<vmem>>, %arg5: memref<64x128xbf16, #tpu.memory_space<vmem>>, %arg6: memref<64x128xf32, #tpu.memory_space<vmem>>, %arg7: memref<128x128xbf16, #tpu.memory_space<vmem>>) attributes {dimension_semantics = [], scalar_prefetch = 0 : i64, scratch_operands = 1 : i64, tpu.core_type = #tpu.core_type<tc>} {
    %c0 = arith.constant 0 : index
    %c0_0 = arith.constant 0 : index
    %0 = vector.load %arg0[%c0, %c0_0] : memref<64x32xf32, #tpu.memory_space<vmem>>, vector<64x32xf32>
    %1 = arith.truncf %0 : vector<64x32xf32> to vector<64x32xbf16>
    %c0_1 = arith.constant 0 : index
    %c0_2 = arith.constant 0 : index
    %2 = vector.load %arg1[%c0_1, %c0_2] : memref<32x32xbf16, #tpu.memory_space<vmem>>, vector<32x32xbf16>
    %cst = arith.constant dense<0.000000e+00> : vector<64x32xf32>
    %3 = tpu.matmul %1, %2, %cst {dimension_numbers = #tpu.dot_dimension_numbers<[1], [0], [0], [1], [0, 0, 1, 1], [], []>} : vector<64x32xbf16>, vector<32x32xbf16>, vector<64x32xf32> -> vector<64x32xf32>
    %c0_3 = arith.constant 0 : index
    %c0_4 = arith.constant 0 : index
    %4 = vector.load %arg2[%c0_3, %c0_4] : memref<1x32xf32, #tpu.memory_space<vmem>>, vector<1x32xf32>
    %5 = vector.broadcast %4 : vector<1x32xf32> to vector<64x32xf32>
    %6 = arith.addf %3, %5 : vector<64x32xf32>
    %cst_5 = arith.constant 0.000000e+00 : f32
    %7 = vector.broadcast %cst_5 : f32 to vector<64x32xf32>
    %8 = arith.maximumf %6, %7 : vector<64x32xf32>
    %9 = arith.truncf %8 : vector<64x32xf32> to vector<64x32xbf16>
    %c0_6 = arith.constant 0 : index
    %c0_7 = arith.constant 0 : index
    %10 = vector.load %arg3[%c0_6, %c0_7] : memref<32x128xbf16, #tpu.memory_space<vmem>>, vector<32x128xbf16>
    %cst_8 = arith.constant dense<0.000000e+00> : vector<64x128xf32>
    %11 = tpu.matmul %9, %10, %cst_8 {dimension_numbers = #tpu.dot_dimension_numbers<[1], [0], [0], [1], [0, 0, 1, 1], [], []>} : vector<64x32xbf16>, vector<32x128xbf16>, vector<64x128xf32> -> vector<64x128xf32>
    %c0_9 = arith.constant 0 : index
    %c0_10 = arith.constant 0 : index
    %12 = vector.load %arg4[%c0_9, %c0_10] : memref<1x128xf32, #tpu.memory_space<vmem>>, vector<1x128xf32>
    %13 = vector.broadcast %12 : vector<1x128xf32> to vector<64x128xf32>
    %14 = arith.addf %11, %13 : vector<64x128xf32>
    %15 = arith.truncf %14 : vector<64x128xf32> to vector<64x128xbf16>
    %c0_11 = arith.constant 0 : index
    %c0_12 = arith.constant 0 : index
    %16 = vector.load %arg7[%c0_11, %c0_12] : memref<128x128xbf16, #tpu.memory_space<vmem>>, vector<64x128xbf16>
    tpu.vector_store %arg7[%c0_11, %c0_12], %15 {strides = array<i32>} : memref<128x128xbf16, #tpu.memory_space<vmem>>, vector<64x128xbf16>,
    %c64 = arith.constant 64 : index
    %c0_13 = arith.constant 0 : index
    %17 = vector.load %arg7[%c64, %c0_13] : memref<128x128xbf16, #tpu.memory_space<vmem>>, vector<64x128xbf16>
    tpu.vector_store %arg7[%c64, %c0_13], %15 {strides = array<i32>} : memref<128x128xbf16, #tpu.memory_space<vmem>>, vector<64x128xbf16>,
    %c0_14 = arith.constant 0 : index
    %c0_15 = arith.constant 0 : index
    %18 = vector.load %arg5[%c0_14, %c0_15] : memref<64x128xbf16, #tpu.memory_space<vmem>>, vector<64x128xbf16>
    %c0_i32 = arith.constant 0 : i32
    %c0_16 = arith.constant 0 : index
    %c0_17 = arith.constant 0 : index
    %19 = vector.load %arg7[%c0_16, %c0_17] : memref<128x128xbf16, #tpu.memory_space<vmem>>, vector<128x128xbf16>
    %cst_18 = arith.constant dense<0.000000e+00> : vector<64x128xf32>
    %20 = tpu.matmul %18, %19, %cst_18 {dimension_numbers = #tpu.dot_dimension_numbers<[1], [0], [0], [1], [0, 0, 1, 1], [], []>} : vector<64x128xbf16>, vector<128x128xbf16>, vector<64x128xf32> -> vector<64x128xf32>
    %21 = arith.truncf %20 : vector<64x128xf32> to vector<64x128xbf16>
    %c0_19 = arith.constant 0 : index
    %c0_20 = arith.constant 0 : index
    %22 = vector.load %arg7[%c0_19, %c0_20] : memref<128x128xbf16, #tpu.memory_space<vmem>>, vector<64x128xbf16>
    tpu.vector_store %arg7[%c0_19, %c0_20], %21 {strides = array<i32>} : memref<128x128xbf16, #tpu.memory_space<vmem>>, vector<64x128xbf16>,
    %c1_i32 = arith.constant 1 : i32
    %c0_21 = arith.constant 0 : index
    %c0_22 = arith.constant 0 : index
    %23 = vector.load %arg7[%c0_21, %c0_22] : memref<128x128xbf16, #tpu.memory_space<vmem>>, vector<128x128xbf16>
    %cst_23 = arith.constant dense<0.000000e+00> : vector<64x128xf32>
    %24 = tpu.matmul %18, %23, %cst_23 {dimension_numbers = #tpu.dot_dimension_numbers<[1], [0], [0], [1], [0, 0, 1, 1], [], []>} : vector<64x128xbf16>, vector<128x128xbf16>, vector<64x128xf32> -> vector<64x128xf32>
    %25 = arith.truncf %24 : vector<64x128xf32> to vector<64x128xbf16>
    %c0_24 = arith.constant 0 : index
    %c0_25 = arith.constant 0 : index
    %26 = vector.load %arg7[%c0_24, %c0_25] : memref<128x128xbf16, #tpu.memory_space<vmem>>, vector<64x128xbf16>
    tpu.vector_store %arg7[%c0_24, %c0_25], %25 {strides = array<i32>} : memref<128x128xbf16, #tpu.memory_space<vmem>>, vector<64x128xbf16>,
    %c2_i32 = arith.constant 2 : i32
    %c0_26 = arith.constant 0 : index
    %c0_27 = arith.constant 0 : index
    %27 = vector.load %arg7[%c0_26, %c0_27] : memref<128x128xbf16, #tpu.memory_space<vmem>>, vector<128x128xbf16>
    %cst_28 = arith.constant dense<0.000000e+00> : vector<64x128xf32>
    %28 = tpu.matmul %18, %27, %cst_28 {dimension_numbers = #tpu.dot_dimension_numbers<[1], [0], [0], [1], [0, 0, 1, 1], [], []>} : vector<64x128xbf16>, vector<128x128xbf16>, vector<64x128xf32> -> vector<64x128xf32>
    %29 = arith.truncf %28 : vector<64x128xf32> to vector<64x128xbf16>
    %c0_29 = arith.constant 0 : index
    %c0_30 = arith.constant 0 : index
    %30 = vector.load %arg7[%c0_29, %c0_30] : memref<128x128xbf16, #tpu.memory_space<vmem>>, vector<64x128xbf16>
    tpu.vector_store %arg7[%c0_29, %c0_30], %29 {strides = array<i32>} : memref<128x128xbf16, #tpu.memory_space<vmem>>, vector<64x128xbf16>,
    %c3_i32 = arith.constant 3 : i32
    %c0_31 = arith.constant 0 : index
    %c0_32 = arith.constant 0 : index
    %31 = vector.load %arg7[%c0_31, %c0_32] : memref<128x128xbf16, #tpu.memory_space<vmem>>, vector<128x128xbf16>
    %cst_33 = arith.constant dense<0.000000e+00> : vector<64x128xf32>
    %32 = tpu.matmul %18, %31, %cst_33 {dimension_numbers = #tpu.dot_dimension_numbers<[1], [0], [0], [1], [0, 0, 1, 1], [], []>} : vector<64x128xbf16>, vector<128x128xbf16>, vector<64x128xf32> -> vector<64x128xf32>
    %33 = arith.truncf %32 : vector<64x128xf32> to vector<64x128xbf16>
    %c0_34 = arith.constant 0 : index
    %c0_35 = arith.constant 0 : index
    %34 = vector.load %arg7[%c0_34, %c0_35] : memref<128x128xbf16, #tpu.memory_space<vmem>>, vector<64x128xbf16>
    tpu.vector_store %arg7[%c0_34, %c0_35], %33 {strides = array<i32>} : memref<128x128xbf16, #tpu.memory_space<vmem>>, vector<64x128xbf16>,
    %c4_i32 = arith.constant 4 : i32
    %c0_36 = arith.constant 0 : index
    %c0_37 = arith.constant 0 : index
    %35 = vector.load %arg7[%c0_36, %c0_37] : memref<128x128xbf16, #tpu.memory_space<vmem>>, vector<128x128xbf16>
    %cst_38 = arith.constant dense<0.000000e+00> : vector<64x128xf32>
    %36 = tpu.matmul %18, %35, %cst_38 {dimension_numbers = #tpu.dot_dimension_numbers<[1], [0], [0], [1], [0, 0, 1, 1], [], []>} : vector<64x128xbf16>, vector<128x128xbf16>, vector<64x128xf32> -> vector<64x128xf32>
    %37 = arith.truncf %36 : vector<64x128xf32> to vector<64x128xbf16>
    %c0_39 = arith.constant 0 : index
    %c0_40 = arith.constant 0 : index
    %38 = vector.load %arg7[%c0_39, %c0_40] : memref<128x128xbf16, #tpu.memory_space<vmem>>, vector<64x128xbf16>
    tpu.vector_store %arg7[%c0_39, %c0_40], %37 {strides = array<i32>} : memref<128x128xbf16, #tpu.memory_space<vmem>>, vector<64x128xbf16>,
    %c0_41 = arith.constant 0 : index
    %c0_42 = arith.constant 0 : index
    %39 = vector.load %arg6[%c0_41, %c0_42] : memref<64x128xf32, #tpu.memory_space<vmem>>, vector<64x128xf32>
    tpu.vector_store %arg6[%c0_41, %c0_42], %36 {strides = array<i32>} : memref<64x128xf32, #tpu.memory_space<vmem>>, vector<64x128xf32>,
    return
  }
}

</mosaic_0001>

<llo_original>
// kernel: appnp_forward.1
$region0: #{appnp_forward.1}
  #allocation0 [shape = 'u32[]', space=smem, size = 0x4, offset = 0x4, fixed_abs, tag = 'smem constant byte address 0x4 - core index']
  #allocation1 [shape = 'u32[144,128]{1,0:T(1,128)}', space=vmem, size = 0x12000, scoped, tag = 'internal scratch']
  #allocation2 [shape = 'bf16[128,128]{1,0:T(16,128)(2,1)}', space=vmem, size = 0x8000, scoped, tag = 'scratch operand']
  %s0 = inlined_call_operand.vmem [shape: f32[64,32], index: 0, kind: input, shape index: {}]
  %s1 = inlined_call_operand.vmem [shape: bf16[32,32], index: 1, kind: input, shape index: {}]
  %s2 = inlined_call_operand.vmem [shape: f32[1,32], index: 2, kind: input, shape index: {}]
  %s3 = inlined_call_operand.vmem [shape: bf16[32,128], index: 3, kind: input, shape index: {}]
  %s4 = inlined_call_operand.vmem [shape: f32[1,128], index: 4, kind: input, shape index: {}]
  %s5 = inlined_call_operand.vmem [shape: bf16[64,128], index: 5, kind: input, shape index: {}]
  %s6 = inlined_call_operand.vmem [shape: f32[64,128], index: 6, kind: output, shape index: {}]
  %s7 = sld [smem:[#allocation0]]
  $region34: #{appnp_forward.1} parent=0
    _
  %s9 = ssub.s32 1, %s7
  %s10 = scalar_select 0, %s9, %s7
  // Predicated region
  $region2: #{appnp_forward.1} parent=0 // pred_check
    _
  $region3: #{appnp_forward.1} parent=0 // pred_check_branch
    %12 = sbr.rel (0) target = $region5
  $region4: #{appnp_forward.1} parent=0 // pred_region
    _
  $region5: #{appnp_forward.1} parent=0 // pred_fallthru
    _
  // Predicated region
  $region6: #{appnp_forward.1} parent=0 // pred_check
    _
  $region7: #{appnp_forward.1} parent=0 // pred_check_branch
    %14 = sbr.rel (0) target = $region9
  $region8: #{appnp_forward.1} parent=0 // pred_region
    _
  $region9: #{appnp_forward.1} parent=0 // pred_fallthru
    _
  // Predicated region
  $region10: #{appnp_forward.1} parent=0 // pred_check
    _
  $region11: #{appnp_forward.1} parent=0 // pred_check_branch
    %16 = sbr.rel (0) target = $region13
  $region12: #{appnp_forward.1} parent=0 // pred_region
    _
  $region13: #{appnp_forward.1} parent=0 // pred_fallthru
    _
  // Predicated region
  $region14: #{appnp_forward.1} parent=0 // pred_check
    _
  $region15: #{appnp_forward.1} parent=0 // pred_check_branch
    %18 = sbr.rel (0) target = $region17
  $region16: #{appnp_forward.1} parent=0 // pred_region
    _
  $region17: #{appnp_forward.1} parent=0 // pred_fallthru
    _
  // Predicated region
  $region18: #{appnp_forward.1} parent=0 // pred_check
    _
  $region19: #{appnp_forward.1} parent=0 // pred_check_branch
    %20 = sbr.rel (0) target = $region21
  $region20: #{appnp_forward.1} parent=0 // pred_region
    _
  $region21: #{appnp_forward.1} parent=0 // pred_fallthru
    _
  // Predicated region
  $region22: #{appnp_forward.1} parent=0 // pred_check
    _
  $region23: #{appnp_forward.1} parent=0 // pred_check_branch
    %22 = sbr.rel (0) target = $region25
  $region24: #{appnp_forward.1} parent=0 // pred_region
    _
  $region25: #{appnp_forward.1} parent=0 // pred_fallthru
    _
  %v24 = vld [vmem:[%s0] sm:$0xff]
  %v25 = vld [vmem:[%s0 + $0x8] sm:$0xff]
  %v26 = vld [vmem:[%s0 + $0x10] sm:$0xff]
  %v27 = vld [vmem:[%s0 + $0x18] sm:$0xff]
  %v28 = vld [vmem:[%s0 + $0x20] sm:$0xff]
  %v29 = vld [vmem:[%s0 + $0x28] sm:$0xff]
  %v30 = vld [vmem:[%s0 + $0x30] sm:$0xff]
  %v31 = vld [vmem:[%s0 + $0x38] sm:$0xff]
  %v32 = vpack.c.bf16 %v25, %v24
  %v33 = vpack.c.bf16 %v27, %v26
  %v34 = vpack.c.bf16 %v29, %v28
  %v35 = vpack.c.bf16 %v31, %v30
  %v36 = vld [vmem:[%s1] sm:$0xf]
  %v37 = vld [vmem:[%s1 + $0x4] sm:$0xf]
  %v38 = vld [vmem:[%s1 + $0x8] sm:$0xf]
  %v39 = vld [vmem:[%s1 + $0xc] sm:$0xf]
  %v40 = vld [vmem:[%s2] sm:$0x1]
  %v42 = vlaneseq
  %v43 = vshrl.u32 %v42, 7
  %v44 = vsub.s32 0, %v43
  %v45 = vrot.slane %v40, %v44
  %v51 = vunpack.c.l.b16 %v36
  %v52 = vunpack.c.l.b16 %v37
  %v53 = vunpack.c.l.b16 %v38
  %v54 = vunpack.c.l.b16 %v39
  %v55 = vpack.c.b16 %v52, %v51
  %v56 = vpack.c.b16 %v54, %v53
  %vm59 = vcmask 261120
  %v61 = vsel %vm59, %v32, 0
  %v64 = vsel %vm59, %v33, 0
  %v67 = vsel %vm59, %v34, 0
  %v70 = vsel %vm59, %v35, 0
  %72 = vmatprep.subr.bf16.mxu0 0
  %73 = vmatpush1.bf16.msra.mxu0 %v55
  %74 = vmatprep.subr.bf16.mxu0 0
  %75 = vmatpush1.bf16.msra.mxu0 %v56
  %76 = vmatprep.subr.bf16.mxu0 0
  %77 = vmatpush1.bf16.msra.mxu0 0
  %78 = vmatprep.subr.bf16.mxu0 0
  %79 = vmatpush1.bf16.msra.mxu0 0
  %80 = vmatprep.subr.bf16.mxu0 0
  %81 = vmatpush1.bf16.msra.mxu0 0
  %82 = vmatprep.subr.bf16.mxu0 0
  %83 = vmatpush1.bf16.msra.mxu0 0
  %84 = vmatprep.subr.bf16.mxu0 0
  %85 = vmatpush1.bf16.msra.mxu0 0
  %86 = vmatprep.subr.bf16.mxu0 0
  %87 = vmatpush1.bf16.msra.mxu0 0
  %88 = vmatprep.subr.bf16.mxu0 0
  %89 = vmatpush1.bf16.msra.mxu0 0
  %90 = vmatprep.subr.bf16.mxu0 0
  %91 = vmatpush1.bf16.msra.mxu0 0
  %92 = vmatprep.subr.bf16.mxu0 0
  %93 = vmatpush1.bf16.msra.mxu0 0
  %94 = vmatprep.subr.bf16.mxu0 0
  %95 = vmatpush1.bf16.msra.mxu0 0
  %96 = vmatprep.subr.bf16.mxu0 0
  %97 = vmatpush1.bf16.msra.mxu0 0
  %98 = vmatprep.subr.bf16.mxu0 0
  %99 = vmatpush1.bf16.msra.mxu0 0
  %100 = vmatprep.subr.bf16.mxu0 0
  %101 = vmatpush1.bf16.msra.mxu0 0
  %102 = vmatprep.subr.bf16.mxu0 0
  %103 = vmatpush1.bf16.msra.mxu0 0
  %104 = vmatprep.mubr.bf16.mxu0 0
  %105 = vmatmul.mubr.bf16.gmra.mrb[0].mxu0 %v61
  %v106 = vpop.f32.mrb[0].mxu0
  %v107 = vadd.f32 %v45, %v106
  %v108 = vpop.f32.mrb[0].mxu0
  %v109 = vpop.f32.mrb[0].mxu0
  %v110 = vadd.f32 %v45, %v109
  %v111 = vpop.f32.mrb[0].mxu0
  %112 = vmatprep.mubr.bf16.mxu0 0
  %113 = vmatmul.mubr.bf16.gmra.mrb[0].mxu0 %v64
  %v114 = vpop.f32.mrb[0].mxu0
  %v115 = vadd.f32 %v45, %v114
  %v116 = vpop.f32.mrb[0].mxu0
  %v117 = vpop.f32.mrb[0].mxu0
  %v118 = vadd.f32 %v45, %v117
  %v119 = vpop.f32.mrb[0].mxu0
  %120 = vmatprep.mubr.bf16.mxu0 0
  %121 = vmatmul.mubr.bf16.gmra.mrb[0].mxu0 %v67
  %v122 = vpop.f32.mrb[0].mxu0
  %v123 = vadd.f32 %v45, %v122
  %v124 = vpop.f32.mrb[0].mxu0
  %v125 = vpop.f32.mrb[0].mxu0
  %v126 = vadd.f32 %v45, %v125
  %v127 = vpop.f32.mrb[0].mxu0
  %128 = vmatprep.mubr.bf16.mxu0 0
  %129 = vmatmul.mubr.bf16.gmra.mrb[0].mxu0 %v70
  %v130 = vpop.f32.mrb[0].mxu0
  %v131 = vadd.f32 %v45, %v130
  %v132 = vpop.f32.mrb[0].mxu0
  %v133 = vpop.f32.mrb[0].mxu0
  %v134 = vadd.f32 %v45, %v133
  %v135 = vpop.f32.mrb[0].mxu0
  %136 = vdwg.mxu0
  %v137 = vmax.f32 %v107, 0.0
  %v138 = vmax.f32 %v110, 0.0
  %v139 = vmax.f32 %v115, 0.0
  %v140 = vmax.f32 %v118, 0.0
  %v141 = vmax.f32 %v123, 0.0
  %v142 = vmax.f32 %v126, 0.0
  %v143 = vmax.f32 %v131, 0.0
  %v144 = vmax.f32 %v134, 0.0
  %v145 = vpack.c.bf16 %v138, %v137
  %v146 = vpack.c.bf16 %v140, %v139
  %v147 = vpack.c.bf16 %v142, %v141
  %v148 = vpack.c.bf16 %v144, %v143
  %v149 = vld [vmem:[%s3] sm:$0xf]
  %v150 = vld [vmem:[%s3 + $0x4] sm:$0xf]
  %v151 = vld [vmem:[%s3 + $0x8] sm:$0xf]
  %v152 = vld [vmem:[%s3 + $0xc] sm:$0xf]
  %v153 = vld [vmem:[%s4] sm:$0x1]
  %v155 = vlaneseq
  %v156 = vshrl.u32 %v155, 7
  %v157 = vsub.s32 0, %v156
  %v158 = vrot.slane %v153, %v157
  %v164 = vunpack.c.l.b16 %v149
  %v165 = vunpack.c.l.b16 %v150
  %v166 = vunpack.c.l.b16 %v151
  %v167 = vunpack.c.l.b16 %v152
  %v168 = vpack.c.b16 %v165, %v164
  %v169 = vpack.c.b16 %v167, %v166
  %v173 = vsel %vm59, %v145, 0
  %v176 = vsel %vm59, %v146, 0
  %v179 = vsel %vm59, %v147, 0
  %v182 = vsel %vm59, %v148, 0
  %184 = vmatprep.subr.bf16.mxu0 0
  %185 = vmatpush1.bf16.msra.mxu0 %v168
  %186 = vmatprep.subr.bf16.mxu0 0
  %187 = vmatpush1.bf16.msra.mxu0 %v169
  %188 = vmatprep.subr.bf16.mxu0 0
  %189 = vmatpush1.bf16.msra.mxu0 0
  %190 = vmatprep.subr.bf16.mxu0 0
  %191 = vmatpush1.bf16.msra.mxu0 0
  %192 = vmatprep.subr.bf16.mxu0 0
  %193 = vmatpush1.bf16.msra.mxu0 0
  %194 = vmatprep.subr.bf16.mxu0 0
  %195 = vmatpush1.bf16.msra.mxu0 0
  %196 = vmatprep.subr.bf16.mxu0 0
  %197 = vmatpush1.bf16.msra.mxu0 0
  %198 = vmatprep.subr.bf16.mxu0 0
  %199 = vmatpush1.bf16.msra.mxu0 0
  %200 = vmatprep.subr.bf16.mxu0 0
  %201 = vmatpush1.bf16.msra.mxu0 0
  %202 = vmatprep.subr.bf16.mxu0 0
  %203 = vmatpush1.bf16.msra.mxu0 0
  %204 = vmatprep.subr.bf16.mxu0 0
  %205 = vmatpush1.bf16.msra.mxu0 0
  %206 = vmatprep.subr.bf16.mxu0 0
  %207 = vmatpush1.bf16.msra.mxu0 0
  %208 = vmatprep.subr.bf16.mxu0 0
  %209 = vmatpush1.bf16.msra.mxu0 0
  %210 = vmatprep.subr.bf16.mxu0 0
  %211 = vmatpush1.bf16.msra.mxu0 0
  %212 = vmatprep.subr.bf16.mxu0 0
  %213 = vmatpush1.bf16.msra.mxu0 0
  %214 = vmatprep.subr.bf16.mxu0 0
  %215 = vmatpush1.bf16.msra.mxu0 0
  %216 = vmatprep.mubr.bf16.mxu0 0
  %217 = vmatmul.mubr.bf16.gmra.mrb[0].mxu0 %v173
  %v218 = vpop.f32.mrb[0].mxu0
  %v219 = vadd.f32 %v158, %v218
  %v220 = vpop.f32.mrb[0].mxu0
  %v221 = vpop.f32.mrb[0].mxu0
  %v222 = vadd.f32 %v158, %v221
  %v223 = vpop.f32.mrb[0].mxu0
  %224 = vmatprep.mubr.bf16.mxu0 0
  %225 = vmatmul.mubr.bf16.gmra.mrb[0].mxu0 %v176
  %v226 = vpop.f32.mrb[0].mxu0
  %v227 = vadd.f32 %v158, %v226
  %v228 = vpop.f32.mrb[0].mxu0
  %v229 = vpop.f32.mrb[0].mxu0
  %v230 = vadd.f32 %v158, %v229
  %v231 = vpop.f32.mrb[0].mxu0
  %232 = vmatprep.mubr.bf16.mxu0 0
  %233 = vmatmul.mubr.bf16.gmra.mrb[0].mxu0 %v179
  %v234 = vpop.f32.mrb[0].mxu0
  %v235 = vadd.f32 %v158, %v234
  %v236 = vpop.f32.mrb[0].mxu0
  %v237 = vpop.f32.mrb[0].mxu0
  %v238 = vadd.f32 %v158, %v237
  %v239 = vpop.f32.mrb[0].mxu0
  %240 = vmatprep.mubr.bf16.mxu0 0
  %241 = vmatmul.mubr.bf16.gmra.mrb[0].mxu0 %v182
  %v242 = vpop.f32.mrb[0].mxu0
  %v243 = vadd.f32 %v158, %v242
  %v244 = vpop.f32.mrb[0].mxu0
  %v245 = vpop.f32.mrb[0].mxu0
  %v246 = vadd.f32 %v158, %v245
  %v247 = vpop.f32.mrb[0].mxu0
  %248 = vdwg.mxu0
  %v249 = vpack.c.bf16 %v222, %v219
  %v250 = vpack.c.bf16 %v230, %v227
  %v251 = vpack.c.bf16 %v238, %v235
  %v252 = vpack.c.bf16 %v246, %v243
  %253 = vst [vmem:[#allocation2] sm:$0xff] %v249
  %254 = vst [vmem:[#allocation2 + $0x8] sm:$0xff] %v250
  %255 = vst [vmem:[#allocation2 + $0x10] sm:$0xff] %v251
  %256 = vst [vmem:[#allocation2 + $0x18] sm:$0xff] %v252
  %257 = vst [vmem:[#allocation2 + $0x20] sm:$0xff] %v249
  %258 = vst [vmem:[#allocation2 + $0x28] sm:$0xff] %v250
  %259 = vst [vmem:[#allocation2 + $0x30] sm:$0xff] %v251
  %260 = vst [vmem:[#allocation2 + $0x38] sm:$0xff] %v252
  %v261 = vld [vmem:[%s5] sm:$0xf]
  %v262 = vld [vmem:[%s5 + $0x4] sm:$0xf]
  %v263 = vld [vmem:[%s5 + $0x8] sm:$0xf]
  %v264 = vld [vmem:[%s5 + $0xc] sm:$0xf]
  %v265 = vld [vmem:[%s5 + $0x10] sm:$0xf]
  %v266 = vld [vmem:[%s5 + $0x14] sm:$0xf]
  %v267 = vld [vmem:[%s5 + $0x18] sm:$0xf]
  %v268 = vld [vmem:[%s5 + $0x1c] sm:$0xf]
  %v269 = vld [vmem:[#allocation2] sm:$0xff]
  %v270 = vld [vmem:[#allocation2 + $0x8] sm:$0xff]
  %v271 = vld [vmem:[#allocation2 + $0x10] sm:$0xff]
  %v272 = vld [vmem:[#allocation2 + $0x18] sm:$0xff]
  %v273 = vld [vmem:[#allocation2 + $0x20] sm:$0xff]
  %v274 = vld [vmem:[#allocation2 + $0x28] sm:$0xff]
  %v275 = vld [vmem:[#allocation2 + $0x30] sm:$0xff]
  %v276 = vld [vmem:[#allocation2 + $0x38] sm:$0xff]
  %v285 = vunpack.c.l.b16 %v261
  %v286 = vunpack.c.l.b16 %v262
  %v287 = vunpack.c.l.b16 %v263
  %v288 = vunpack.c.l.b16 %v264
  %v289 = vunpack.c.l.b16 %v265
  %v290 = vunpack.c.l.b16 %v266
  %v291 = vunpack.c.l.b16 %v267
  %v292 = vunpack.c.l.b16 %v268
  %v293 = vpack.c.b16 %v286, %v285
  %v294 = vpack.c.b16 %v288, %v287
  %v295 = vpack.c.b16 %v290, %v289
  %v296 = vpack.c.b16 %v292, %v291
  %301 = vmatprep.subr.bf16.mxu0 0
  %302 = vmatpush1.bf16.msra.mxu0 %v269
  %303 = vmatprep.subr.bf16.mxu0 0
  %304 = vmatpush1.bf16.msra.mxu0 %v270
  %305 = vmatprep.subr.bf16.mxu0 0
  %306 = vmatpush1.bf16.msra.mxu0 %v271
  %307 = vmatprep.subr.bf16.mxu0 0
  %308 = vmatpush1.bf16.msra.mxu0 %v272
  %309 = vmatprep.subr.bf16.mxu0 0
  %310 = vmatpush1.bf16.msra.mxu0 %v273
  %311 = vmatprep.subr.bf16.mxu0 0
  %312 = vmatpush1.bf16.msra.mxu0 %v274
  %313 = vmatprep.subr.bf16.mxu0 0
  %314 = vmatpush1.bf16.msra.mxu0 %v275
  %315 = vmatprep.subr.bf16.mxu0 0
  %316 = vmatpush1.bf16.msra.mxu0 %v276
  %317 = vmatprep.subr.bf16.mxu0 0
  %318 = vmatpush1.bf16.msra.mxu0 0
  %319 = vmatprep.subr.bf16.mxu0 0
  %320 = vmatpush1.bf16.msra.mxu0 0
  %321 = vmatprep.subr.bf16.mxu0 0
  %322 = vmatpush1.bf16.msra.mxu0 0
  %323 = vmatprep.subr.bf16.mxu0 0
  %324 = vmatpush1.bf16.msra.mxu0 0
  %325 = vmatprep.subr.bf16.mxu0 0
  %326 = vmatpush1.bf16.msra.mxu0 0
  %327 = vmatprep.subr.bf16.mxu0 0
  %328 = vmatpush1.bf16.msra.mxu0 0
  %329 = vmatprep.subr.bf16.mxu0 0
  %330 = vmatpush1.bf16.msra.mxu0 0
  %331 = vmatprep.subr.bf16.mxu0 0
  %332 = vmatpush1.bf16.msra.mxu0 0
  %333 = vmatprep.mubr.bf16.mxu0 0
  %334 = vmatmul.mubr.bf16.gmra.mrb[0].mxu0 %v293
  %v335 = vpop.f32.mrb[0].mxu0
  %v336 = vadd.f32 0.0, %v335
  %v337 = vpop.f32.mrb[0].mxu0
  %v338 = vpop.f32.mrb[0].mxu0
  %v339 = vadd.f32 0.0, %v338
  %v340 = vpop.f32.mrb[0].mxu0
  %341 = vmatprep.mubr.bf16.mxu0 0
  %342 = vmatmul.mubr.bf16.gmra.mrb[0].mxu0 %v294
  %v343 = vpop.f32.mrb[0].mxu0
  %v344 = vadd.f32 0.0, %v343
  %v345 = vpop.f32.mrb[0].mxu0
  %v346 = vpop.f32.mrb[0].mxu0
  %v347 = vadd.f32 0.0, %v346
  %v348 = vpop.f32.mrb[0].mxu0
  %349 = vmatprep.mubr.bf16.mxu0 0
  %350 = vmatmul.mubr.bf16.gmra.mrb[0].mxu0 %v295
  %v351 = vpop.f32.mrb[0].mxu0
  %v352 = vadd.f32 0.0, %v351
  %v353 = vpop.f32.mrb[0].mxu0
  %v354 = vpop.f32.mrb[0].mxu0
  %v355 = vadd.f32 0.0, %v354
  %v356 = vpop.f32.mrb[0].mxu0
  %357 = vmatprep.mubr.bf16.mxu0 0
  %358 = vmatmul.mubr.bf16.gmra.mrb[0].mxu0 %v296
  %v359 = vpop.f32.mrb[0].mxu0
  %v360 = vadd.f32 0.0, %v359
  %v361 = vpop.f32.mrb[0].mxu0
  %v362 = vpop.f32.mrb[0].mxu0
  %v363 = vadd.f32 0.0, %v362
  %v364 = vpop.f32.mrb[0].mxu0
  %365 = vdwg.mxu0
  %v366 = vpack.c.bf16 %v339, %v336
  %v367 = vpack.c.bf16 %v347, %v344
  %v368 = vpack.c.bf16 %v355, %v352
  %v369 = vpack.c.bf16 %v363, %v360
  %370 = vst [vmem:[#allocation2] sm:$0xff] %v366
  %371 = vst [vmem:[#allocation2 + $0x8] sm:$0xff] %v367
  %372 = vst [vmem:[#allocation2 + $0x10] sm:$0xff] %v368
  %373 = vst [vmem:[#allocation2 + $0x18] sm:$0xff] %v369
  %v374 = vld [vmem:[#allocation2] sm:$0xff]
  %v375 = vld [vmem:[#allocation2 + $0x8] sm:$0xff]
  %v376 = vld [vmem:[#allocation2 + $0x10] sm:$0xff]
  %v377 = vld [vmem:[#allocation2 + $0x18] sm:$0xff]
  %v378 = vld [vmem:[#allocation2 + $0x20] sm:$0xff]
  %v379 = vld [vmem:[#allocation2 + $0x28] sm:$0xff]
  %v380 = vld [vmem:[#allocation2 + $0x30] sm:$0xff]
  %v381 = vld [vmem:[#allocation2 + $0x38] sm:$0xff]
  %382 = vmatprep.subr.bf16.mxu0 0
  %383 = vmatpush1.bf16.msra.mxu0 %v374
  %384 = vmatprep.subr.bf16.mxu0 0
  %385 = vmatpush1.bf16.msra.mxu0 %v375
  %386 = vmatprep.subr.bf16.mxu0 0
  %387 = vmatpush1.bf16.msra.mxu0 %v376
  %388 = vmatprep.subr.bf16.mxu0 0
  %389 = vmatpush1.bf16.msra.mxu0 %v377
  %390 = vmatprep.subr.bf16.mxu0 0
  %391 = vmatpush1.bf16.msra.mxu0 %v378
  %392 = vmatprep.subr.bf16.mxu0 0
  %393 = vmatpush1.bf16.msra.mxu0 %v379
  %394 = vmatprep.subr.bf16.mxu0 0
  %395 = vmatpush1.bf16.msra.mxu0 %v380
  %396 = vmatprep.subr.bf16.mxu0 0
  %397 = vmatpush1.bf16.msra.mxu0 %v381
  %398 = vmatprep.subr.bf16.mxu0 0
  %399 = vmatpush1.bf16.msra.mxu0 0
  %400 = vmatprep.subr.bf16.mxu0 0
  %401 = vmatpush1.bf16.msra.mxu0 0
  %402 = vmatprep.subr.bf16.mxu0 0
  %403 = vmatpush1.bf16.msra.mxu0 0
  %404 = vmatprep.subr.bf16.mxu0 0
  %405 = vmatpush1.bf16.msra.mxu0 0
  %406 = vmatprep.subr.bf16.mxu0 0
  %407 = vmatpush1.bf16.msra.mxu0 0
  %408 = vmatprep.subr.bf16.mxu0 0
  %409 = vmatpush1.bf16.msra.mxu0 0
  %410 = vmatprep.subr.bf16.mxu0 0
  %411 = vmatpush1.bf16.msra.mxu0 0
  %412 = vmatprep.subr.bf16.mxu0 0
  %413 = vmatpush1.bf16.msra.mxu0 0
  %414 = vmatprep.mubr.bf16.mxu0 0
  %415 = vmatmul.mubr.bf16.gmra.mrb[0].mxu0 %v293
  %v416 = vpop.f32.mrb[0].mxu0
  %v417 = vadd.f32 0.0, %v416
  %v418 = vpop.f32.mrb[0].mxu0
  %v419 = vpop.f32.mrb[0].mxu0
  %v420 = vadd.f32 0.0, %v419
  %v421 = vpop.f32.mrb[0].mxu0
  %422 = vmatprep.mubr.bf16.mxu0 0
  %423 = vmatmul.mubr.bf16.gmra.mrb[0].mxu0 %v294
  %v424 = vpop.f32.mrb[0].mxu0
  %v425 = vadd.f32 0.0, %v424
  %v426 = vpop.f32.mrb[0].mxu0
  %v427 = vpop.f32.mrb[0].mxu0
  %v428 = vadd.f32 0.0, %v427
  %v429 = vpop.f32.mrb[0].mxu0
  %430 = vmatprep.mubr.bf16.mxu0 0
  %431 = vmatmul.mubr.bf16.gmra.mrb[0].mxu0 %v295
  %v432 = vpop.f32.mrb[0].mxu0
  %v433 = vadd.f32 0.0, %v432
  %v434 = vpop.f32.mrb[0].mxu0
  %v435 = vpop.f32.mrb[0].mxu0
  %v436 = vadd.f32 0.0, %v435
  %v437 = vpop.f32.mrb[0].mxu0
  %438 = vmatprep.mubr.bf16.mxu0 0
  %439 = vmatmul.mubr.bf16.gmra.mrb[0].mxu0 %v296
  %v440 = vpop.f32.mrb[0].mxu0
  %v441 = vadd.f32 0.0, %v440
  %v442 = vpop.f32.mrb[0].mxu0
  %v443 = vpop.f32.mrb[0].mxu0
  %v444 = vadd.f32 0.0, %v443
  %v445 = vpop.f32.mrb[0].mxu0
  %446 = vdwg.mxu0
  %v447 = vpack.c.bf16 %v420, %v417
  %v448 = vpack.c.bf16 %v428, %v425
  %v449 = vpack.c.bf16 %v436, %v433
  %v450 = vpack.c.bf16 %v444, %v441
  %451 = vst [vmem:[#allocation2] sm:$0xff] %v447
  %452 = vst [vmem:[#allocation2 + $0x8] sm:$0xff] %v448
  %453 = vst [vmem:[#allocation2 + $0x10] sm:$0xff] %v449
  %454 = vst [vmem:[#allocation2 + $0x18] sm:$0xff] %v450
  %v455 = vld [vmem:[#allocation2] sm:$0xff]
  %v456 = vld [vmem:[#allocation2 + $0x8] sm:$0xff]
  %v457 = vld [vmem:[#allocation2 + $0x10] sm:$0xff]
  %v458 = vld [vmem:[#allocation2 + $0x18] sm:$0xff]
  %v459 = vld [vmem:[#allocation2 + $0x20] sm:$0xff]
  %v460 = vld [vmem:[#allocation2 + $0x28] sm:$0xff]
  %v461 = vld [vmem:[#allocation2 + $0x30] sm:$0xff]
  %v462 = vld [vmem:[#allocation2 + $0x38] sm:$0xff]
  %463 = vmatprep.subr.bf16.mxu0 0
  %464 = vmatpush1.bf16.msra.mxu0 %v455
  %465 = vmatprep.subr.bf16.mxu0 0
  %466 = vmatpush1.bf16.msra.mxu0 %v456
  %467 = vmatprep.subr.bf16.mxu0 0
  %468 = vmatpush1.bf16.msra.mxu0 %v457
  %469 = vmatprep.subr.bf16.mxu0 0
  %470 = vmatpush1.bf16.msra.mxu0 %v458
  %471 = vmatprep.subr.bf16.mxu0 0
  %472 = vmatpush1.bf16.msra.mxu0 %v459
  %473 = vmatprep.subr.bf16.mxu0 0
  %474 = vmatpush1.bf16.msra.mxu0 %v460
  %475 = vmatprep.subr.bf16.mxu0 0
  %476 = vmatpush1.bf16.msra.mxu0 %v461
  %477 = vmatprep.subr.bf16.mxu0 0
  %478 = vmatpush1.bf16.msra.mxu0 %v462
  %479 = vmatprep.subr.bf16.mxu0 0
  %480 = vmatpush1.bf16.msra.mxu0 0
  %481 = vmatprep.subr.bf16.mxu0 0
  %482 = vmatpush1.bf16.msra.mxu0 0
  %483 = vmatprep.subr.bf16.mxu0 0
  %484 = vmatpush1.bf16.msra.mxu0 0
  %485 = vmatprep.subr.bf16.mxu0 0
  %486 = vmatpush1.bf16.msra.mxu0 0
  %487 = vmatprep.subr.bf16.mxu0 0
  %488 = vmatpush1.bf16.msra.mxu0 0
  %489 = vmatprep.subr.bf16.mxu0 0
  %490 = vmatpush1.bf16.msra.mxu0 0
  %491 = vmatprep.subr.bf16.mxu0 0
  %492 = vmatpush1.bf16.msra.mxu0 0
  %493 = vmatprep.subr.bf16.mxu0 0
  %494 = vmatpush1.bf16.msra.mxu0 0
  %495 = vmatprep.mubr.bf16.mxu0 0
  %496 = vmatmul.mubr.bf16.gmra.mrb[0].mxu0 %v293
  %v497 = vpop.f32.mrb[0].mxu0
  %v498 = vadd.f32 0.0, %v497
  %v499 = vpop.f32.mrb[0].mxu0
  %v500 = vpop.f32.mrb[0].mxu0
  %v501 = vadd.f32 0.0, %v500
  %v502 = vpop.f32.mrb[0].mxu0
  %503 = vmatprep.mubr.bf16.mxu0 0
  %504 = vmatmul.mubr.bf16.gmra.mrb[0].mxu0 %v294
  %v505 = vpop.f32.mrb[0].mxu0
  %v506 = vadd.f32 0.0, %v505
  %v507 = vpop.f32.mrb[0].mxu0
  %v508 = vpop.f32.mrb[0].mxu0
  %v509 = vadd.f32 0.0, %v508
  %v510 = vpop.f32.mrb[0].mxu0
  %511 = vmatprep.mubr.bf16.mxu0 0
  %512 = vmatmul.mubr.bf16.gmra.mrb[0].mxu0 %v295
  %v513 = vpop.f32.mrb[0].mxu0
  %v514 = vadd.f32 0.0, %v513
  %v515 = vpop.f32.mrb[0].mxu0
  %v516 = vpop.f32.mrb[0].mxu0
  %v517 = vadd.f32 0.0, %v516
  %v518 = vpop.f32.mrb[0].mxu0
  %519 = vmatprep.mubr.bf16.mxu0 0
  %520 = vmatmul.mubr.bf16.gmra.mrb[0].mxu0 %v296
  %v521 = vpop.f32.mrb[0].mxu0
  %v522 = vadd.f32 0.0, %v521
  %v523 = vpop.f32.mrb[0].mxu0
  %v524 = vpop.f32.mrb[0].mxu0
  %v525 = vadd.f32 0.0, %v524
  %v526 = vpop.f32.mrb[0].mxu0
  %527 = vdwg.mxu0
  %v528 = vpack.c.bf16 %v501, %v498
  %v529 = vpack.c.bf16 %v509, %v506
  %v530 = vpack.c.bf16 %v517, %v514
  %v531 = vpack.c.bf16 %v525, %v522
  %532 = vst [vmem:[#allocation2] sm:$0xff] %v528
  %533 = vst [vmem:[#allocation2 + $0x8] sm:$0xff] %v529
  %534 = vst [vmem:[#allocation2 + $0x10] sm:$0xff] %v530
  %535 = vst [vmem:[#allocation2 + $0x18] sm:$0xff] %v531
  %v536 = vld [vmem:[#allocation2] sm:$0xff]
  %v537 = vld [vmem:[#allocation2 + $0x8] sm:$0xff]
  %v538 = vld [vmem:[#allocation2 + $0x10] sm:$0xff]
  %v539 = vld [vmem:[#allocation2 + $0x18] sm:$0xff]
  %v540 = vld [vmem:[#allocation2 + $0x20] sm:$0xff]
  %v541 = vld [vmem:[#allocation2 + $0x28] sm:$0xff]
  %v542 = vld [vmem:[#allocation2 + $0x30] sm:$0xff]
  %v543 = vld [vmem:[#allocation2 + $0x38] sm:$0xff]
  %544 = vmatprep.subr.bf16.mxu0 0
  %545 = vmatpush1.bf16.msra.mxu0 %v536
  %546 = vmatprep.subr.bf16.mxu0 0
  %547 = vmatpush1.bf16.msra.mxu0 %v537
  %548 = vmatprep.subr.bf16.mxu0 0
  %549 = vmatpush1.bf16.msra.mxu0 %v538
  %550 = vmatprep.subr.bf16.mxu0 0
  %551 = vmatpush1.bf16.msra.mxu0 %v539
  %552 = vmatprep.subr.bf16.mxu0 0
  %553 = vmatpush1.bf16.msra.mxu0 %v540
  %554 = vmatprep.subr.bf16.mxu0 0
  %555 = vmatpush1.bf16.msra.mxu0 %v541
  %556 = vmatprep.subr.bf16.mxu0 0
  %557 = vmatpush1.bf16.msra.mxu0 %v542
  %558 = vmatprep.subr.bf16.mxu0 0
  %559 = vmatpush1.bf16.msra.mxu0 %v543
  %560 = vmatprep.subr.bf16.mxu0 0
  %561 = vmatpush1.bf16.msra.mxu0 0
  %562 = vmatprep.subr.bf16.mxu0 0
  %563 = vmatpush1.bf16.msra.mxu0 0
  %564 = vmatprep.subr.bf16.mxu0 0
  %565 = vmatpush1.bf16.msra.mxu0 0
  %566 = vmatprep.subr.bf16.mxu0 0
  %567 = vmatpush1.bf16.msra.mxu0 0
  %568 = vmatprep.subr.bf16.mxu0 0
  %569 = vmatpush1.bf16.msra.mxu0 0
  %570 = vmatprep.subr.bf16.mxu0 0
  %571 = vmatpush1.bf16.msra.mxu0 0
  %572 = vmatprep.subr.bf16.mxu0 0
  %573 = vmatpush1.bf16.msra.mxu0 0
  %574 = vmatprep.subr.bf16.mxu0 0
  %575 = vmatpush1.bf16.msra.mxu0 0
  %576 = vmatprep.mubr.bf16.mxu0 0
  %577 = vmatmul.mubr.bf16.gmra.mrb[0].mxu0 %v293
  %v578 = vpop.f32.mrb[0].mxu0
  %v579 = vadd.f32 0.0, %v578
  %v580 = vpop.f32.mrb[0].mxu0
  %v581 = vpop.f32.mrb[0].mxu0
  %v582 = vadd.f32 0.0, %v581
  %v583 = vpop.f32.mrb[0].mxu0
  %584 = vmatprep.mubr.bf16.mxu0 0
  %585 = vmatmul.mubr.bf16.gmra.mrb[0].mxu0 %v294
  %v586 = vpop.f32.mrb[0].mxu0
  %v587 = vadd.f32 0.0, %v586
  %v588 = vpop.f32.mrb[0].mxu0
  %v589 = vpop.f32.mrb[0].mxu0
  %v590 = vadd.f32 0.0, %v589
  %v591 = vpop.f32.mrb[0].mxu0
  %592 = vmatprep.mubr.bf16.mxu0 0
  %593 = vmatmul.mubr.bf16.gmra.mrb[0].mxu0 %v295
  %v594 = vpop.f32.mrb[0].mxu0
  %v595 = vadd.f32 0.0, %v594
  %v596 = vpop.f32.mrb[0].mxu0
  %v597 = vpop.f32.mrb[0].mxu0
  %v598 = vadd.f32 0.0, %v597
  %v599 = vpop.f32.mrb[0].mxu0
  %600 = vmatprep.mubr.bf16.mxu0 0
  %601 = vmatmul.mubr.bf16.gmra.mrb[0].mxu0 %v296
  %v602 = vpop.f32.mrb[0].mxu0
  %v603 = vadd.f32 0.0, %v602
  %v604 = vpop.f32.mrb[0].mxu0
  %v605 = vpop.f32.mrb[0].mxu0
  %v606 = vadd.f32 0.0, %v605
  %v607 = vpop.f32.mrb[0].mxu0
  %608 = vdwg.mxu0
  %v609 = vpack.c.bf16 %v582, %v579
  %v610 = vpack.c.bf16 %v590, %v587
  %v611 = vpack.c.bf16 %v598, %v595
  %v612 = vpack.c.bf16 %v606, %v603
  %613 = vst [vmem:[#allocation2] sm:$0xff] %v609
  %614 = vst [vmem:[#allocation2 + $0x8] sm:$0xff] %v610
  %615 = vst [vmem:[#allocation2 + $0x10] sm:$0xff] %v611
  %616 = vst [vmem:[#allocation2 + $0x18] sm:$0xff] %v612
  %v617 = vld [vmem:[#allocation2] sm:$0xff]
  %v618 = vld [vmem:[#allocation2 + $0x8] sm:$0xff]
  %v619 = vld [vmem:[#allocation2 + $0x10] sm:$0xff]
  %v620 = vld [vmem:[#allocation2 + $0x18] sm:$0xff]
  %v621 = vld [vmem:[#allocation2 + $0x20] sm:$0xff]
  %v622 = vld [vmem:[#allocation2 + $0x28] sm:$0xff]
  %v623 = vld [vmem:[#allocation2 + $0x30] sm:$0xff]
  %v624 = vld [vmem:[#allocation2 + $0x38] sm:$0xff]
  %625 = vmatprep.subr.bf16.mxu0 0
  %626 = vmatpush1.bf16.msra.mxu0 %v617
  %627 = vmatprep.subr.bf16.mxu0 0
  %628 = vmatpush1.bf16.msra.mxu0 %v618
  %629 = vmatprep.subr.bf16.mxu0 0
  %630 = vmatpush1.bf16.msra.mxu0 %v619
  %631 = vmatprep.subr.bf16.mxu0 0
  %632 = vmatpush1.bf16.msra.mxu0 %v620
  %633 = vmatprep.subr.bf16.mxu0 0
  %634 = vmatpush1.bf16.msra.mxu0 %v621
  %635 = vmatprep.subr.bf16.mxu0 0
  %636 = vmatpush1.bf16.msra.mxu0 %v622
  %637 = vmatprep.subr.bf16.mxu0 0
  %638 = vmatpush1.bf16.msra.mxu0 %v623
  %639 = vmatprep.subr.bf16.mxu0 0
  %640 = vmatpush1.bf16.msra.mxu0 %v624
  %641 = vmatprep.subr.bf16.mxu0 0
  %642 = vmatpush1.bf16.msra.mxu0 0
  %643 = vmatprep.subr.bf16.mxu0 0
  %644 = vmatpush1.bf16.msra.mxu0 0
  %645 = vmatprep.subr.bf16.mxu0 0
  %646 = vmatpush1.bf16.msra.mxu0 0
  %647 = vmatprep.subr.bf16.mxu0 0
  %648 = vmatpush1.bf16.msra.mxu0 0
  %649 = vmatprep.subr.bf16.mxu0 0
  %650 = vmatpush1.bf16.msra.mxu0 0
  %651 = vmatprep.subr.bf16.mxu0 0
  %652 = vmatpush1.bf16.msra.mxu0 0
  %653 = vmatprep.subr.bf16.mxu0 0
  %654 = vmatpush1.bf16.msra.mxu0 0
  %655 = vmatprep.subr.bf16.mxu0 0
  %656 = vmatpush1.bf16.msra.mxu0 0
  %657 = vmatprep.mubr.bf16.mxu0 0
  %658 = vmatmul.mubr.bf16.gmra.mrb[0].mxu0 %v293
  %v659 = vpop.f32.mrb[0].mxu0
  %v660 = vadd.f32 0.0, %v659
  %v661 = vpop.f32.mrb[0].mxu0
  %v662 = vpop.f32.mrb[0].mxu0
  %v663 = vadd.f32 0.0, %v662
  %v664 = vpop.f32.mrb[0].mxu0
  %665 = vmatprep.mubr.bf16.mxu0 0
  %666 = vmatmul.mubr.bf16.gmra.mrb[0].mxu0 %v294
  %v667 = vpop.f32.mrb[0].mxu0
  %v668 = vadd.f32 0.0, %v667
  %v669 = vpop.f32.mrb[0].mxu0
  %v670 = vpop.f32.mrb[0].mxu0
  %v671 = vadd.f32 0.0, %v670
  %v672 = vpop.f32.mrb[0].mxu0
  %673 = vmatprep.mubr.bf16.mxu0 0
  %674 = vmatmul.mubr.bf16.gmra.mrb[0].mxu0 %v295
  %v675 = vpop.f32.mrb[0].mxu0
  %v676 = vadd.f32 0.0, %v675
  %v677 = vpop.f32.mrb[0].mxu0
  %v678 = vpop.f32.mrb[0].mxu0
  %v679 = vadd.f32 0.0, %v678
  %v680 = vpop.f32.mrb[0].mxu0
  %681 = vmatprep.mubr.bf16.mxu0 0
  %682 = vmatmul.mubr.bf16.gmra.mrb[0].mxu0 %v296
  %v683 = vpop.f32.mrb[0].mxu0
  %v684 = vadd.f32 0.0, %v683
  %v685 = vpop.f32.mrb[0].mxu0
  %v686 = vpop.f32.mrb[0].mxu0
  %v687 = vadd.f32 0.0, %v686
  %v688 = vpop.f32.mrb[0].mxu0
  %689 = vdwg.mxu0
  %v690 = vpack.c.bf16 %v663, %v660
  %v691 = vpack.c.bf16 %v671, %v668
  %v692 = vpack.c.bf16 %v679, %v676
  %v693 = vpack.c.bf16 %v687, %v684
  %694 = vst [vmem:[#allocation2] sm:$0xff] %v690
  %695 = vst [vmem:[#allocation2 + $0x8] sm:$0xff] %v691
  %696 = vst [vmem:[#allocation2 + $0x10] sm:$0xff] %v692
  %697 = vst [vmem:[#allocation2 + $0x18] sm:$0xff] %v693
  %698 = vst [vmem:[%s6] sm:$0xff] %v660
  %699 = vst [vmem:[%s6 + $0x8] sm:$0xff] %v663
  %700 = vst [vmem:[%s6 + $0x10] sm:$0xff] %v668
  %701 = vst [vmem:[%s6 + $0x18] sm:$0xff] %v671
  %702 = vst [vmem:[%s6 + $0x20] sm:$0xff] %v676
  %703 = vst [vmem:[%s6 + $0x28] sm:$0xff] %v679
  %704 = vst [vmem:[%s6 + $0x30] sm:$0xff] %v684
  %705 = vst [vmem:[%s6 + $0x38] sm:$0xff] %v687
  // Predicated region
  $region26: #{appnp_forward.1} parent=0 // pred_check
    _
  $region27: #{appnp_forward.1} parent=0 // pred_check_branch
    %707 = sbr.rel (0) target = $region29
  $region28: #{appnp_forward.1} parent=0 // pred_region
    _
  $region29: #{appnp_forward.1} parent=0 // pred_fallthru
    _
  // Predicated region
  $region30: #{appnp_forward.1} parent=0 // pred_check
    _
  $region31: #{appnp_forward.1} parent=0 // pred_check_branch
    %709 = sbr.rel (0) target = $region33
  $region32: #{appnp_forward.1} parent=0 // pred_region
    _
  $region33: #{appnp_forward.1} parent=0 // pred_fallthru
    _

</llo_original>
